<compile_context>
chip_gen: v5e
topology: v5e:2x2
jax: 0.10.0
libtpu: 0.0.40
codegen_flags: <defaults>
</compile_context>

<pallas_src>
import math
from functools import partial

import jax
import jax.numpy as jnp
from jax.experimental import pallas as pl
from jax.experimental.pallas import tpu as pltpu


def _round_up(x, m):
    return (x + m - 1) // m * m


def _fused_attention_kernel(x_q_ref, x_full_ref, w_q_ref, w_kv_ref, bias_ref,
                            o_ref, kt_ref, v_ref, *, dpad, scale):
    # ---- One-time K/V projection into persistent VMEM scratch. ------------
    # The grid axis is sequential ("arbitrary"), so step 0 runs first and all
    # later query tiles reuse the resident K^T / V (no HBM round trip).
    @pl.when(pl.program_id(0) == 0)
    def _():
        kv = jnp.dot(x_full_ref[...], w_kv_ref[...],
                     preferred_element_type=jnp.float32)      # [seq_pad, 2*dpad]
        kt_ref[...] = kv[:, :dpad].T.astype(kt_ref.dtype)     # [dpad, seq_pad] bf16
        v_ref[...] = kv[:, dpad:].astype(v_ref.dtype)         # [seq_pad, dpad] bf16

    # ---- Per-tile Q projection (1/sqrt(dim_k) folded into Q). -------------
    q = jnp.dot(x_q_ref[...], w_q_ref[...],
                preferred_element_type=jnp.float32) * scale    # [tq, dpad] f32

    # ---- Scores: bf16 MXU operands, f32 accumulation, additive key mask. --
    s = jnp.dot(q.astype(jnp.bfloat16), kt_ref[...],
                preferred_element_type=jnp.float32)            # [tq, seq_pad] f32
    s = s + bias_ref[...]                                      # 0 / -1e30 per key

    # ---- Numerically-stable softmax in f32; normalization deferred. -------
    m = jnp.max(s, axis=-1, keepdims=True)
    p = jnp.exp(s - m)
    l = jnp.sum(p, axis=-1, keepdims=True)

    o = jnp.dot(p.astype(jnp.bfloat16), v_ref[...],
                preferred_element_type=jnp.float32)            # [tq, dpad] f32
    o_ref[...] = (o * pl.reciprocal(l, approx=True)).astype(o_ref.dtype)


def self_attention(x, w_query, w_key, w_value, *, tq_max=256):
    """Pallas implementation of Self_Attention.forward.

    Args:
      x:        [seq, dim_in]
      w_query:  [dim_out, dim_in]   (PyTorch nn.Linear weight layout)
      w_key:    [dim_out, dim_in]
      w_value:  [dim_out, dim_in]
      tq_max:   max query-tile rows (use 128 on v5e; 256 fills v6e/v7x MXUs).
    Returns:
      context:  [seq, dim_out]
    """
    seq, dim_in = x.shape
    dim_out = w_query.shape[0]
    dtype = x.dtype

    din_pad = _round_up(dim_in, 128)
    dpad = _round_up(dim_out, 128)          # lane-dense Q/K/V/context

    # Guarded query-tile selection: tq is a multiple of 8 (128 when we
    # actually tile), and divides seq_pad, so BlockSpecs satisfy (8,128).
    tq_max = max(8, (int(tq_max) // 8) * 8)
    if seq <= tq_max:
        tq = _round_up(seq, 8)
        seq_pad = tq
    else:
        tq = (tq_max // 128) * 128 if tq_max >= 128 else tq_max
        seq_pad = _round_up(seq, tq)
    n_q = seq_pad // tq

    def pad2(a, rows, cols):
        return jnp.pad(a, ((0, rows - a.shape[0]), (0, cols - a.shape[1])))

    x_pad = pad2(x, seq_pad, din_pad)
    w_q = pad2(w_query.T, din_pad, dpad)                          # [din_pad, dpad]
    w_kv = jnp.concatenate([pad2(w_key.T, din_pad, dpad),
                            pad2(w_value.T, din_pad, dpad)], axis=1)  # [din_pad, 2*dpad]

    # Additive key-padding bias row: 0 for real keys, -1e30 for padded keys.
    bias = jnp.where(jnp.arange(seq_pad)[None, :] < seq,
                     jnp.float32(0.0), jnp.float32(-1e30)).astype(jnp.float32)

    scale = 1.0 / math.sqrt(float(dim_out))

    # Explicit VMEM budget (v7x has 64 MiB/TC); inputs are double-buffered by
    # the default BlockSpec pipeline, K^T/V scratch are single bf16 copies.
    est = (2 * tq * din_pad * 4            # x query tile
           + 2 * seq_pad * din_pad * 4     # full x (constant block)
           + 2 * din_pad * dpad * 4        # W_q
           + 2 * din_pad * 2 * dpad * 4    # [W_k | W_v]
           + 2 * seq_pad * 4               # bias row
           + 2 * tq * dpad * 4             # output tile
           + 2 * dpad * seq_pad * 2        # K^T + V scratch (bf16)
           + 4 * tq * seq_pad * 4          # s/p temporaries headroom
           + seq_pad * 2 * dpad * 4)       # one-time KV projection temp
    vmem_limit = int(min(max(2 * est, 32 * 1024 * 1024), 64 * 1024 * 1024))

    ctx = pl.pallas_call(
        partial(_fused_attention_kernel, dpad=dpad, scale=scale),
        out_shape=jax.ShapeDtypeStruct((seq_pad, dpad), dtype),
        grid=(n_q,),
        in_specs=[
            pl.BlockSpec((tq, din_pad), lambda i: (i, 0)),        # x rows for Q tile
            pl.BlockSpec((seq_pad, din_pad), lambda i: (0, 0)),   # full x for K/V (fetched once)
            pl.BlockSpec((din_pad, dpad), lambda i: (0, 0)),      # W_q
            pl.BlockSpec((din_pad, 2 * dpad), lambda i: (0, 0)),  # [W_k | W_v]
            pl.BlockSpec((1, seq_pad), lambda i: (0, 0)),         # key-pad bias row
        ],
        out_specs=pl.BlockSpec((tq, dpad), lambda i: (i, 0)),
        scratch_shapes=[
            pltpu.VMEM((dpad, seq_pad), jnp.bfloat16),   # K^T, resident across tiles
            pltpu.VMEM((seq_pad, dpad), jnp.bfloat16),   # V, resident across tiles
        ],
        # "arbitrary": grid steps run sequentially so the step-0 K/V projection
        # is visible to all later query tiles.
        compiler_params=pltpu.CompilerParams(
            dimension_semantics=("arbitrary",),
            vmem_limit_bytes=vmem_limit),
    )(x_pad, x_pad, w_q, w_kv, bias)

    return ctx[:seq, :dim_out]


def self_attention_ref(x, w_query, w_key, w_value):
    q = x @ w_query.T
    k = x @ w_key.T
    v = x @ w_value.T
    s = (q @ k.T) / math.sqrt(k.shape[-1])
    w = jax.nn.softmax(s, axis=-1)
    return w @ v


if __name__ == "__main__":
    dim_in, dim_out = 32, 16

    key = jax.random.PRNGKey(0)
    kq, kk, kv, kx1, kx2 = jax.random.split(key, 5)

    # nn.Linear-style init: U(-1/sqrt(dim_in), 1/sqrt(dim_in)), no bias.
    bound = 1.0 / math.sqrt(dim_in)
    w_query = jax.random.uniform(kq, (dim_out, dim_in), jnp.float32, -bound, bound)
    w_key = jax.random.uniform(kk, (dim_out, dim_in), jnp.float32, -bound, bound)
    w_value = jax.random.uniform(kv, (dim_out, dim_in), jnp.float32, -bound, bound)

    ok = True
    # Case 1: tiny aligned shape (seq=8), single tile.
    # Case 2: seq=200 with tq_max=64 -> seq_pad=256, 4 query tiles: exercises
    #         the multi-tile grid, scratch K/V reuse across steps, and the
    #         key-padding bias mask.
    for kx, seq, tqm in ((kx1, 8, 256), (kx2, 200, 64)):
        x = jax.random.normal(kx, (seq, dim_in), dtype=jnp.float32)

        out = self_attention(x, w_query, w_key, w_value, tq_max=tqm)
        out = jax.block_until_ready(out)

        ref = self_attention_ref(x, w_query, w_key, w_value)
        ok &= out.shape == (seq, dim_out)
        # bf16 MXU operands + approx reciprocal -> ~1e-3-level error vs f32 ref.
        ok &= bool(jnp.allclose(out, ref, atol=1e-2, rtol=1e-2))

    assert ok, "mismatch vs reference"
    print("KERNEL_OK")
</pallas_src>

<mosaic_0001>
module attributes {stable_mosaic.version = 11 : i64} {
  func.func @_fused_attention_kernel(%arg0: i32, %arg1: memref<8x128xf32, #tpu.memory_space<vmem>>, %arg2: memref<8x128xf32, #tpu.memory_space<vmem>>, %arg3: memref<128x128xf32, #tpu.memory_space<vmem>>, %arg4: memref<128x256xf32, #tpu.memory_space<vmem>>, %arg5: memref<1x8xf32, #tpu.memory_space<vmem>>, %arg6: memref<8x128xf32, #tpu.memory_space<vmem>>, %arg7: memref<128x8xbf16, #tpu.memory_space<vmem>>, %arg8: memref<8x128xbf16, #tpu.memory_space<vmem>>) attributes {dimension_semantics = [#tpu.dimension_semantics<arbitrary>], iteration_bounds = array<i64: 1>, scalar_prefetch = 0 : i64, scratch_operands = 2 : i64, tpu.core_type = #tpu.core_type<tc>, window_params = [{transform_indices = @transform_0, window_bounds = array<i64: 8, 128>}, {pipeline_mode = #tpu.pipeline_mode<synchronous>, transform_indices = @transform_1, window_bounds = array<i64: 8, 128>}, {pipeline_mode = #tpu.pipeline_mode<synchronous>, transform_indices = @transform_2, window_bounds = array<i64: 128, 128>}, {pipeline_mode = #tpu.pipeline_mode<synchronous>, transform_indices = @transform_3, window_bounds = array<i64: 128, 256>}, {pipeline_mode = #tpu.pipeline_mode<synchronous>, transform_indices = @transform_4, window_bounds = array<i64: 1, 8>}, {transform_indices = @transform_5, window_bounds = array<i64: 8, 128>}]} {
    %c0_i32 = arith.constant 0 : i32
    %0 = arith.cmpi eq, %arg0, %c0_i32 : i32
    %1 = arith.extui %0 : i1 to i32
    %c0_i32_0 = arith.constant 0 : i32
    %2 = arith.cmpi ne, %1, %c0_i32_0 : i32
    scf.if %2 {
      %c0_17 = arith.constant 0 : index
      %c0_18 = arith.constant 0 : index
      %28 = vector.load %arg2[%c0_17, %c0_18] : memref<8x128xf32, #tpu.memory_space<vmem>>, vector<8x128xf32>
      %c0_19 = arith.constant 0 : index
      %c0_20 = arith.constant 0 : index
      %29 = vector.load %arg4[%c0_19, %c0_20] : memref<128x256xf32, #tpu.memory_space<vmem>>, vector<128x256xf32>
      %cst_21 = arith.constant dense<0.000000e+00> : vector<8x256xf32>
      %30 = tpu.matmul %28, %29, %cst_21 {dimension_numbers = #tpu.dot_dimension_numbers<[1], [0], [0], [1], [0, 0, 1, 1], [], []>} : vector<8x128xf32>, vector<128x256xf32>, vector<8x256xf32> -> vector<8x256xf32>
      %31 = vector.extract_strided_slice %30 {offsets = [0, 0], sizes = [8, 128], strides = [1, 1]} : vector<8x256xf32> to vector<8x128xf32>
      %32 = tpu.transpose %31, [1, 0] : vector<8x128xf32> -> vector<128x8xf32>
      %33 = arith.truncf %32 : vector<128x8xf32> to vector<128x8xbf16>
      %c0_22 = arith.constant 0 : index
      %c0_23 = arith.constant 0 : index
      %34 = vector.load %arg7[%c0_22, %c0_23] : memref<128x8xbf16, #tpu.memory_space<vmem>>, vector<128x8xbf16>
      tpu.vector_store %arg7[%c0_22, %c0_23], %33 {strides = array<i32>} : memref<128x8xbf16, #tpu.memory_space<vmem>>, vector<128x8xbf16>,
      %35 = vector.extract_strided_slice %30 {offsets = [0, 128], sizes = [8, 128], strides = [1, 1]} : vector<8x256xf32> to vector<8x128xf32>
      %36 = arith.truncf %35 : vector<8x128xf32> to vector<8x128xbf16>
      %c0_24 = arith.constant 0 : index
      %c0_25 = arith.constant 0 : index
      %37 = vector.load %arg8[%c0_24, %c0_25] : memref<8x128xbf16, #tpu.memory_space<vmem>>, vector<8x128xbf16>
      tpu.vector_store %arg8[%c0_24, %c0_25], %36 {strides = array<i32>} : memref<8x128xbf16, #tpu.memory_space<vmem>>, vector<8x128xbf16>,
    } else {
    }
    %c0 = arith.constant 0 : index
    %c0_1 = arith.constant 0 : index
    %3 = vector.load %arg1[%c0, %c0_1] : memref<8x128xf32, #tpu.memory_space<vmem>>, vector<8x128xf32>
    %c0_2 = arith.constant 0 : index
    %c0_3 = arith.constant 0 : index
    %4 = vector.load %arg3[%c0_2, %c0_3] : memref<128x128xf32, #tpu.memory_space<vmem>>, vector<128x128xf32>
    %cst = arith.constant dense<0.000000e+00> : vector<8x128xf32>
    %5 = tpu.matmul %3, %4, %cst {dimension_numbers = #tpu.dot_dimension_numbers<[1], [0], [0], [1], [0, 0, 1, 1], [], []>} : vector<8x128xf32>, vector<128x128xf32>, vector<8x128xf32> -> vector<8x128xf32>
    %cst_4 = arith.constant 2.500000e-01 : f32
    %6 = vector.broadcast %cst_4 : f32 to vector<8x128xf32>
    %7 = arith.mulf %5, %6 : vector<8x128xf32>
    %8 = arith.truncf %7 : vector<8x128xf32> to vector<8x128xbf16>
    %c0_5 = arith.constant 0 : index
    %c0_6 = arith.constant 0 : index
    %9 = vector.load %arg7[%c0_5, %c0_6] : memref<128x8xbf16, #tpu.memory_space<vmem>>, vector<128x8xbf16>
    %cst_7 = arith.constant dense<0.000000e+00> : vector<8x8xf32>
    %10 = tpu.matmul %8, %9, %cst_7 {dimension_numbers = #tpu.dot_dimension_numbers<[1], [0], [0], [1], [0, 0, 1, 1], [], []>} : vector<8x128xbf16>, vector<128x8xbf16>, vector<8x8xf32> -> vector<8x8xf32>
    %c0_8 = arith.constant 0 : index
    %c0_9 = arith.constant 0 : index
    %11 = vector.load %arg5[%c0_8, %c0_9] : memref<1x8xf32, #tpu.memory_space<vmem>>, vector<1x8xf32>
    %12 = vector.broadcast %11 : vector<1x8xf32> to vector<8x8xf32>
    %13 = arith.addf %10, %12 : vector<8x8xf32>
    %cst_10 = arith.constant dense<0xFF800000> : vector<8xf32>
    %14 = vector.multi_reduction <maximumf>, %13, %cst_10 [1] : vector<8x8xf32> to vector<8xf32>
    %15 = vector.shape_cast %14 : vector<8xf32> to vector<8x1xf32>
    %16 = vector.broadcast %15 : vector<8x1xf32> to vector<8x8xf32>
    %17 = arith.subf %13, %16 : vector<8x8xf32>
    %18 = math.exp %17 : vector<8x8xf32>
    %cst_11 = arith.constant dense<0.000000e+00> : vector<8xf32>
    %19 = vector.multi_reduction <add>, %18, %cst_11 [1] : vector<8x8xf32> to vector<8xf32>
    %20 = vector.shape_cast %19 : vector<8xf32> to vector<8x1xf32>
    %21 = arith.truncf %18 : vector<8x8xf32> to vector<8x8xbf16>
    %c0_12 = arith.constant 0 : index
    %c0_13 = arith.constant 0 : index
    %22 = vector.load %arg8[%c0_12, %c0_13] : memref<8x128xbf16, #tpu.memory_space<vmem>>, vector<8x128xbf16>
    %cst_14 = arith.constant dense<0.000000e+00> : vector<8x128xf32>
    %23 = tpu.matmul %21, %22, %cst_14 {dimension_numbers = #tpu.dot_dimension_numbers<[1], [0], [0], [1], [0, 0, 1, 1], [], []>} : vector<8x8xbf16>, vector<8x128xbf16>, vector<8x128xf32> -> vector<8x128xf32>
    %24 = tpu.reciprocal %20 {approx = true} : vector<8x1xf32> -> vector<8x1xf32>
    %25 = vector.broadcast %24 : vector<8x1xf32> to vector<8x128xf32>
    %26 = arith.mulf %23, %25 : vector<8x128xf32>
    %c0_15 = arith.constant 0 : index
    %c0_16 = arith.constant 0 : index
    %27 = vector.load %arg6[%c0_15, %c0_16] : memref<8x128xf32, #tpu.memory_space<vmem>>, vector<8x128xf32>
    tpu.vector_store %arg6[%c0_15, %c0_16], %26 {strides = array<i32>} : memref<8x128xf32, #tpu.memory_space<vmem>>, vector<8x128xf32>,
    return
  }
  func.func @transform_0(%arg0: i32) -> (i32, i32) {
    %c0_i32 = arith.constant 0 : i32
    %c0_i32_0 = arith.constant 0 : i32
    return %arg0, %c0_i32 : i32, i32
  }
  func.func @transform_1(%arg0: i32) -> (i32, i32) {
    %c0_i32 = arith.constant 0 : i32
    %c0_i32_0 = arith.constant 0 : i32
    %c0_i32_1 = arith.constant 0 : i32
    return %c0_i32, %c0_i32_0 : i32, i32
  }
  func.func @transform_2(%arg0: i32) -> (i32, i32) {
    %c0_i32 = arith.constant 0 : i32
    %c0_i32_0 = arith.constant 0 : i32
    %c0_i32_1 = arith.constant 0 : i32
    return %c0_i32, %c0_i32_0 : i32, i32
  }
  func.func @transform_3(%arg0: i32) -> (i32, i32) {
    %c0_i32 = arith.constant 0 : i32
    %c0_i32_0 = arith.constant 0 : i32
    %c0_i32_1 = arith.constant 0 : i32
    return %c0_i32, %c0_i32_0 : i32, i32
  }
  func.func @transform_4(%arg0: i32) -> (i32, i32) {
    %c0_i32 = arith.constant 0 : i32
    %c0_i32_0 = arith.constant 0 : i32
    %c0_i32_1 = arith.constant 0 : i32
    return %c0_i32, %c0_i32_0 : i32, i32
  }
  func.func @transform_5(%arg0: i32) -> (i32, i32) {
    %c0_i32 = arith.constant 0 : i32
    %c0_i32_0 = arith.constant 0 : i32
    return %arg0, %c0_i32 : i32, i32
  }
}

</mosaic_0001>

<llo_original>
// kernel: tpu_custom_call.1
$region0: #{tpu_custom_call.1}
  #allocation0 [shape = 'u32[]', space=smem, size = 0x4, offset = 0x4, fixed_abs, tag = 'smem constant byte address 0x4 - core index']
  #allocation1 [shape = 'u32[72,128]{1,0:T(1,128)}', space=vmem, size = 0x9000, scoped, tag = 'internal scratch']
  #allocation2 [shape = 'bf16[128,8]{1,0:T(8,128)(2,1)}', space=vmem, size = 0x8000, scoped, tag = 'scratch operand']
  #allocation3 [shape = 'bf16[8,128]{1,0:T(8,128)(2,1)}', space=vmem, size = 0x800, scoped, tag = 'scratch operand']
  %s0 = inlined_call_operand.hbm [shape: f32[8,128], index: 0, kind: input, shape index: {}]
  %s1 = inlined_call_operand.hbm [shape: f32[8,128], index: 1, kind: input, shape index: {}]
  %s2 = inlined_call_operand.hbm [shape: f32[128,128], index: 2, kind: input, shape index: {}]
  %s3 = inlined_call_operand.hbm [shape: f32[128,256], index: 3, kind: input, shape index: {}]
  %s4 = inlined_call_operand.vmem [shape: f32[1,8], index: 4, kind: input, shape index: {}]
  %s5 = inlined_call_operand.hbm [shape: f32[8,128], index: 5, kind: output, shape index: {}]
  %s6 = sld [smem:[#allocation0]]
  $region50: #{tpu_custom_call.1} parent=0
    _
  %s8 = ssub.s32 1, %s6
  %s9 = scalar_select 0, %s8, %s6
  $region1: #{tpu_custom_call.1} parent=0
    #allocation4 [shape = 'u8[4096]{0}', space=vmem, size = 0x1000, scoped, tag = 'input window, operand 0, single buffered']
    #allocation5 [shape = 's32[1]{0}', space=sflag, size = 0x4, scoped, tag = 'scoped memory for tpu_custom_call.1']
    #allocation6 [shape = 's32[1]{0}', space=sflag, size = 0x4, scoped, tag = 'scoped memory for tpu_custom_call.1']
    #allocation7 [shape = 'u8[4096]{0}', space=vmem, size = 0x1000, scoped, tag = 'input window, operand 1, single buffered']
    #allocation8 [shape = 's32[1]{0}', space=sflag, size = 0x4, scoped, tag = 'scoped memory for tpu_custom_call.1']
    #allocation9 [shape = 'u8[65536]{0}', space=vmem, size = 0x10000, scoped, tag = 'input window, operand 2, single buffered']
    #allocation10 [shape = 'u8[131072]{0}', space=vmem, size = 0x20000, scoped, tag = 'input window, operand 3, single buffered']
    #allocation11 [shape = 's32[1]{0}', space=sflag, size = 0x4, scoped, tag = 'scoped memory for tpu_custom_call.1']
    #allocation12 [shape = 'u8[4096]{0}', space=vmem, size = 0x1000, scoped, tag = 'output window, operand 0, single buffered']
    %10 = vsyncpa [#allocation5], 0
    %11 = vsyncpa [#allocation8], 0
    %12 = vsyncpa [#allocation11], 0
    %13 = vsyncpa [#allocation6], 0
    // Predicated region
    $region2: #{tpu_custom_call.1} parent=1 // pred_check
      _
    $region3: #{tpu_custom_call.1} parent=1 // pred_check_branch
      %15 = sbr.rel (0) target = $region5
    $region4: #{tpu_custom_call.1} parent=1 // pred_region
      %17 = vsyncadd [#allocation5], 0
      %s19 = sshll.u32 %s0, 4
      %s20 = int_to_ptr.hbm [resolvable:$true] %s19
      %s21 = sshll.u32 [#allocation4], 4
      %s22 = int_to_ptr.vmem [resolvable:$true] %s21
      %24 = dma.hbm_to_vmem [thread:$0]  %s20, 128, %s22, [#allocation5]
    $region5: #{tpu_custom_call.1} parent=1 // pred_fallthru
      _
    // Predicated region
    $region6: #{tpu_custom_call.1} parent=1 // pred_check
      _
    $region7: #{tpu_custom_call.1} parent=1 // pred_check_branch
      %26 = sbr.rel (0) target = $region9
    $region8: #{tpu_custom_call.1} parent=1 // pred_region
      %28 = vsyncadd [#allocation8], 0
      %s30 = sshll.u32 %s1, 4
      %s31 = int_to_ptr.hbm [resolvable:$true] %s30
      %s32 = sshll.u32 [#allocation7], 4
      %s33 = int_to_ptr.vmem [resolvable:$true] %s32
      %35 = dma.hbm_to_vmem [thread:$0]  %s31, 128, %s33, [#allocation8]
    $region9: #{tpu_custom_call.1} parent=1 // pred_fallthru
      _
    // Predicated region
    $region10: #{tpu_custom_call.1} parent=1 // pred_check
      _
    $region11: #{tpu_custom_call.1} parent=1 // pred_check_branch
      %37 = sbr.rel (0) target = $region13
    $region12: #{tpu_custom_call.1} parent=1 // pred_region
      %39 = vsyncadd [#allocation8], 0
      %s40 = sshll.u32 %s2, 4
      %s41 = int_to_ptr.hbm [resolvable:$true] %s40
      %s42 = sshll.u32 [#allocation9], 4
      %s43 = int_to_ptr.vmem [resolvable:$true] %s42
      %48 = dma.hbm_to_vmem [thread:$0]  %s41, 2048, %s43, [#allocation8], 128, 128, 8
    $region13: #{tpu_custom_call.1} parent=1 // pred_fallthru
      _
    // Predicated region
    $region14: #{tpu_custom_call.1} parent=1 // pred_check
      _
    $region15: #{tpu_custom_call.1} parent=1 // pred_check_branch
      %50 = sbr.rel (0) target = $region17
    $region16: #{tpu_custom_call.1} parent=1 // pred_region
      %52 = vsyncadd [#allocation11], 0
      %s53 = sshll.u32 %s3, 4
      %s54 = int_to_ptr.hbm [resolvable:$true] %s53
      %s55 = sshll.u32 [#allocation10], 4
      %s56 = int_to_ptr.vmem [resolvable:$true] %s55
      %61 = dma.hbm_to_vmem [thread:$0]  %s54, 4096, %s56, [#allocation11], 256, 256, 16
    $region17: #{tpu_custom_call.1} parent=1 // pred_fallthru
      _
    // Predicated region
    $region18: #{tpu_custom_call.1} parent=1 // pred_check
      _
    $region19: #{tpu_custom_call.1} parent=1 // pred_check_branch
      %63 = sbr.rel (0) target = $region21
    $region20: #{tpu_custom_call.1} parent=1 // pred_region
      _
    $region21: #{tpu_custom_call.1} parent=1 // pred_fallthru
      _
    // Predicated region
    $region22: #{tpu_custom_call.1} parent=1 // pred_check
      _
    $region23: #{tpu_custom_call.1} parent=1 // pred_check_branch
      %65 = sbr.rel (0) target = $region25
    $region24: #{tpu_custom_call.1} parent=1 // pred_region
      %67 = dma.done [#allocation5], 128
    $region25: #{tpu_custom_call.1} parent=1 // pred_fallthru
      _
    // Predicated region
    $region26: #{tpu_custom_call.1} parent=1 // pred_check
      _
    $region27: #{tpu_custom_call.1} parent=1 // pred_check_branch
      %69 = sbr.rel (0) target = $region29
    $region28: #{tpu_custom_call.1} parent=1 // pred_region
      %71 = dma.done [#allocation8], 128
    $region29: #{tpu_custom_call.1} parent=1 // pred_fallthru
      _
    // Predicated region
    $region30: #{tpu_custom_call.1} parent=1 // pred_check
      _
    $region31: #{tpu_custom_call.1} parent=1 // pred_check_branch
      %73 = sbr.rel (0) target = $region33
    $region32: #{tpu_custom_call.1} parent=1 // pred_region
      %75 = dma.done [#allocation8], 2048
    $region33: #{tpu_custom_call.1} parent=1 // pred_fallthru
      _
    // Predicated region
    $region34: #{tpu_custom_call.1} parent=1 // pred_check
      _
    $region35: #{tpu_custom_call.1} parent=1 // pred_check_branch
      %77 = sbr.rel (0) target = $region37
    $region36: #{tpu_custom_call.1} parent=1 // pred_region
      %79 = dma.done [#allocation11], 4096
    $region37: #{tpu_custom_call.1} parent=1 // pred_fallthru
      _
    %p81 = scmp.eq.s32.totalorder 0, 0
    // Predicated region
    $region38: #{tpu_custom_call.1} parent=1 // pred_check
      %p82 = pneg %p81
    $region39: #{tpu_custom_call.1} parent=1 // pred_check_branch
      %84 = sbr.rel (%p82) target = $region41
    $region40: #{tpu_custom_call.1} parent=1 // pred_region
      %v85 = vld [vmem:[#allocation7] sm:$0xff]
      %v86 = vld [vmem:[#allocation10] sm:$0xff]
      %v87 = vld [vmem:[#allocation10 + $0x8] sm:$0xff]
      %v88 = vld [vmem:[#allocation10 + $0x10] sm:$0xff]
      %v89 = vld [vmem:[#allocation10 + $0x18] sm:$0xff]
      %v90 = vld [vmem:[#allocation10 + $0x20] sm:$0xff]
      %v91 = vld [vmem:[#allocation10 + $0x28] sm:$0xff]
      %v92 = vld [vmem:[#allocation10 + $0x30] sm:$0xff]
      %v93 = vld [vmem:[#allocation10 + $0x38] sm:$0xff]
      %v94 = vld [vmem:[#allocation10 + $0x40] sm:$0xff]
      %v95 = vld [vmem:[#allocation10 + $0x48] sm:$0xff]
      %v96 = vld [vmem:[#allocation10 + $0x50] sm:$0xff]
      %v97 = vld [vmem:[#allocation10 + $0x58] sm:$0xff]
      %v98 = vld [vmem:[#allocation10 + $0x60] sm:$0xff]
      %v99 = vld [vmem:[#allocation10 + $0x68] sm:$0xff]
      %v100 = vld [vmem:[#allocation10 + $0x70] sm:$0xff]
      %v101 = vld [vmem:[#allocation10 + $0x78] sm:$0xff]
      %v102 = vld [vmem:[#allocation10 + $0x80] sm:$0xff]
      %v103 = vld [vmem:[#allocation10 + $0x88] sm:$0xff]
      %v104 = vld [vmem:[#allocation10 + $0x90] sm:$0xff]
      %v105 = vld [vmem:[#allocation10 + $0x98] sm:$0xff]
      %v106 = vld [vmem:[#allocation10 + $0xa0] sm:$0xff]
      %v107 = vld [vmem:[#allocation10 + $0xa8] sm:$0xff]
      %v108 = vld [vmem:[#allocation10 + $0xb0] sm:$0xff]
      %v109 = vld [vmem:[#allocation10 + $0xb8] sm:$0xff]
      %v110 = vld [vmem:[#allocation10 + $0xc0] sm:$0xff]
      %v111 = vld [vmem:[#allocation10 + $0xc8] sm:$0xff]
      %v112 = vld [vmem:[#allocation10 + $0xd0] sm:$0xff]
      %v113 = vld [vmem:[#allocation10 + $0xd8] sm:$0xff]
      %v114 = vld [vmem:[#allocation10 + $0xe0] sm:$0xff]
      %v115 = vld [vmem:[#allocation10 + $0xe8] sm:$0xff]
      %v116 = vld [vmem:[#allocation10 + $0xf0] sm:$0xff]
      %v117 = vld [vmem:[#allocation10 + $0xf8] sm:$0xff]
      %118 = vmatpush.msra.mxu0 %v116
      %119 = vmatpush.msra.mxu0 %v114
      %120 = vmatpush.msra.mxu0 %v112
      %121 = vmatpush.msra.mxu0 %v110
      %122 = vmatpush.msra.mxu0 %v108
      %123 = vmatpush.msra.mxu0 %v106
      %124 = vmatpush.msra.mxu0 %v104
      %125 = vmatpush.msra.mxu0 %v102
      %126 = vmatpush.msra.mxu0 %v100
      %127 = vmatpush.msra.mxu0 %v98
      %128 = vmatpush.msra.mxu0 %v96
      %129 = vmatpush.msra.mxu0 %v94
      %130 = vmatpush.msra.mxu0 %v92
      %131 = vmatpush.msra.mxu0 %v90
      %132 = vmatpush.msra.mxu0 %v88
      %133 = vmatpush.msra.mxu0 %v86
      %134 = vmatmul.f32.gmra.mxu0 %v85
      %v135 = vpop.f32.mrf.mxu0
      %v136 = vadd.f32 0.0, %v135
      %137 = vdwg.mxu0
      %138 = vmatpush.msra.mxu0 %v117
      %139 = vmatpush.msra.mxu0 %v115
      %140 = vmatpush.msra.mxu0 %v113
      %141 = vmatpush.msra.mxu0 %v111
      %142 = vmatpush.msra.mxu0 %v109
      %143 = vmatpush.msra.mxu0 %v107
      %144 = vmatpush.msra.mxu0 %v105
      %145 = vmatpush.msra.mxu0 %v103
      %146 = vmatpush.msra.mxu0 %v101
      %147 = vmatpush.msra.mxu0 %v99
      %148 = vmatpush.msra.mxu0 %v97
      %149 = vmatpush.msra.mxu0 %v95
      %150 = vmatpush.msra.mxu0 %v93
      %151 = vmatpush.msra.mxu0 %v91
      %152 = vmatpush.msra.mxu0 %v89
      %153 = vmatpush.msra.mxu0 %v87
      %154 = vmatmul.f32.gmra.mxu0 %v85
      %v155 = vpop.f32.mrf.mxu0
      %v156 = vadd.f32 0.0, %v155
      %157 = vdwg.mxu0
      %158 = vxpose.xlu0.b32.start [1/16] %v136, 128
      %159 = vxpose.xlu0.b32.cont [2/16] 0.0, 128
      %160 = vxpose.xlu0.b32.cont [3/16] 0.0, 128
      %161 = vxpose.xlu0.b32.cont [4/16] 0.0, 128
      %162 = vxpose.xlu0.b32.cont [5/16] 0.0, 128
      %163 = vxpose.xlu0.b32.cont [6/16] 0.0, 128
      %164 = vxpose.xlu0.b32.cont [7/16] 0.0, 128
      %165 = vxpose.xlu0.b32.cont [8/16] 0.0, 128
      %166 = vxpose.xlu0.b32.cont [9/16] 0.0, 128
      %167 = vxpose.xlu0.b32.cont [10/16] 0.0, 128
      %168 = vxpose.xlu0.b32.cont [11/16] 0.0, 128
      %169 = vxpose.xlu0.b32.cont [12/16] 0.0, 128
      %170 = vxpose.xlu0.b32.cont [13/16] 0.0, 128
      %171 = vxpose.xlu0.b32.cont [14/16] 0.0, 128
      %172 = vxpose.xlu0.b32.cont [15/16] 0.0, 128
      %173 = vxpose.xlu0.b32.end [16/16] 0.0, 128
      %v174 = vpop.trf.xlu0
      %v175 = vpop.trf.xlu0
      %v176 = vpop.trf.xlu0
      %v177 = vpop.trf.xlu0
      %v178 = vpop.trf.xlu0
      %v179 = vpop.trf.xlu0
      %v180 = vpop.trf.xlu0
      %v181 = vpop.trf.xlu0
      %v182 = vpop.trf.xlu0
      %v183 = vpop.trf.xlu0
      %v184 = vpop.trf.xlu0
      %v185 = vpop.trf.xlu0
      %v186 = vpop.trf.xlu0
      %v187 = vpop.trf.xlu0
      %v188 = vpop.trf.xlu0
      %v189 = vpop.trf.xlu0
      %v190 = vpack.c.bf16 %v174, %v174
      %v191 = vpack.c.bf16 %v175, %v175
      %v192 = vpack.c.bf16 %v176, %v176
      %v193 = vpack.c.bf16 %v177, %v177
      %v194 = vpack.c.bf16 %v178, %v178
      %v195 = vpack.c.bf16 %v179, %v179
      %v196 = vpack.c.bf16 %v180, %v180
      %v197 = vpack.c.bf16 %v181, %v181
      %v198 = vpack.c.bf16 %v182, %v182
      %v199 = vpack.c.bf16 %v183, %v183
      %v200 = vpack.c.bf16 %v184, %v184
      %v201 = vpack.c.bf16 %v185, %v185
      %v202 = vpack.c.bf16 %v186, %v186
      %v203 = vpack.c.bf16 %v187, %v187
      %v204 = vpack.c.bf16 %v188, %v188
      %v205 = vpack.c.bf16 %v189, %v189
      %vm206 = vcmask 60416
      %207 = vst.msk [vmem:[#allocation2] sm:$0xf] %vm206, %v190
      %208 = vst.msk [vmem:[#allocation2 + $0x4] sm:$0xf] %vm206, %v191
      %209 = vst.msk [vmem:[#allocation2 + $0x8] sm:$0xf] %vm206, %v192
      %210 = vst.msk [vmem:[#allocation2 + $0xc] sm:$0xf] %vm206, %v193
      %211 = vst.msk [vmem:[#allocation2 + $0x10] sm:$0xf] %vm206, %v194
      %212 = vst.msk [vmem:[#allocation2 + $0x14] sm:$0xf] %vm206, %v195
      %213 = vst.msk [vmem:[#allocation2 + $0x18] sm:$0xf] %vm206, %v196
      %214 = vst.msk [vmem:[#allocation2 + $0x1c] sm:$0xf] %vm206, %v197
      %215 = vst.msk [vmem:[#allocation2 + $0x20] sm:$0xf] %vm206, %v198
      %216 = vst.msk [vmem:[#allocation2 + $0x24] sm:$0xf] %vm206, %v199
      %217 = vst.msk [vmem:[#allocation2 + $0x28] sm:$0xf] %vm206, %v200
      %218 = vst.msk [vmem:[#allocation2 + $0x2c] sm:$0xf] %vm206, %v201
      %219 = vst.msk [vmem:[#allocation2 + $0x30] sm:$0xf] %vm206, %v202
      %220 = vst.msk [vmem:[#allocation2 + $0x34] sm:$0xf] %vm206, %v203
      %221 = vst.msk [vmem:[#allocation2 + $0x38] sm:$0xf] %vm206, %v204
      %222 = vst.msk [vmem:[#allocation2 + $0x3c] sm:$0xf] %vm206, %v205
      %v223 = vpack.c.bf16 %v156, %v156
      %224 = vst [vmem:[#allocation3] sm:$0xf] %v223
    $region41: #{tpu_custom_call.1} parent=1 // pred_fallthru
      _
    %v225 = vld [vmem:[#allocation4] sm:$0xff]
    %v226 = vld [vmem:[#allocation9] sm:$0xff]
    %v227 = vld [vmem:[#allocation9 + $0x8] sm:$0xff]
    %v228 = vld [vmem:[#allocation9 + $0x10] sm:$0xff]
    %v229 = vld [vmem:[#allocation9 + $0x18] sm:$0xff]
    %v230 = vld [vmem:[#allocation9 + $0x20] sm:$0xff]
    %v231 = vld [vmem:[#allocation9 + $0x28] sm:$0xff]
    %v232 = vld [vmem:[#allocation9 + $0x30] sm:$0xff]
    %v233 = vld [vmem:[#allocation9 + $0x38] sm:$0xff]
    %v234 = vld [vmem:[#allocation9 + $0x40] sm:$0xff]
    %v235 = vld [vmem:[#allocation9 + $0x48] sm:$0xff]
    %v236 = vld [vmem:[#allocation9 + $0x50] sm:$0xff]
    %v237 = vld [vmem:[#allocation9 + $0x58] sm:$0xff]
    %v238 = vld [vmem:[#allocation9 + $0x60] sm:$0xff]
    %v239 = vld [vmem:[#allocation9 + $0x68] sm:$0xff]
    %v240 = vld [vmem:[#allocation9 + $0x70] sm:$0xff]
    %v241 = vld [vmem:[#allocation9 + $0x78] sm:$0xff]
    %242 = vmatpush.msra.mxu0 %v241
    %243 = vmatpush.msra.mxu0 %v240
    %244 = vmatpush.msra.mxu0 %v239
    %245 = vmatpush.msra.mxu0 %v238
    %246 = vmatpush.msra.mxu0 %v237
    %247 = vmatpush.msra.mxu0 %v236
    %248 = vmatpush.msra.mxu0 %v235
    %249 = vmatpush.msra.mxu0 %v234
    %250 = vmatpush.msra.mxu0 %v233
    %251 = vmatpush.msra.mxu0 %v232
    %252 = vmatpush.msra.mxu0 %v231
    %253 = vmatpush.msra.mxu0 %v230
    %254 = vmatpush.msra.mxu0 %v229
    %255 = vmatpush.msra.mxu0 %v228
    %256 = vmatpush.msra.mxu0 %v227
    %257 = vmatpush.msra.mxu0 %v226
    %258 = vmatmul.f32.gmra.mxu0 %v225
    %v259 = vpop.f32.mrf.mxu0
    %v260 = vadd.f32 0.0, %v259
    %261 = vdwg.mxu0
    %v262 = vmul.f32 %v260, 0.25
    %v263 = vpack.c.bf16 %v262, %v262
    %v264 = vld [vmem:[#allocation2] sm:$0xf]
    %v265 = vld [vmem:[#allocation2 + $0x4] sm:$0xf]
    %v266 = vld [vmem:[#allocation2 + $0x8] sm:$0xf]
    %v267 = vld [vmem:[#allocation2 + $0xc] sm:$0xf]
    %v268 = vld [vmem:[#allocation2 + $0x10] sm:$0xf]
    %v269 = vld [vmem:[#allocation2 + $0x14] sm:$0xf]
    %v270 = vld [vmem:[#allocation2 + $0x18] sm:$0xf]
    %v271 = vld [vmem:[#allocation2 + $0x1c] sm:$0xf]
    %v272 = vld [vmem:[#allocation2 + $0x20] sm:$0xf]
    %v273 = vld [vmem:[#allocation2 + $0x24] sm:$0xf]
    %v274 = vld [vmem:[#allocation2 + $0x28] sm:$0xf]
    %v275 = vld [vmem:[#allocation2 + $0x2c] sm:$0xf]
    %v276 = vld [vmem:[#allocation2 + $0x30] sm:$0xf]
    %v277 = vld [vmem:[#allocation2 + $0x34] sm:$0xf]
    %v278 = vld [vmem:[#allocation2 + $0x38] sm:$0xf]
    %v279 = vld [vmem:[#allocation2 + $0x3c] sm:$0xf]
    %v280 = vld [vmem:[%s4] sm:$0x1]
    %v282 = vperm.slane %v280, 0
    %v300 = vunpack.c.l.b16 %v264
    %v301 = vunpack.c.l.b16 %v265
    %v302 = vunpack.c.l.b16 %v266
    %v303 = vunpack.c.l.b16 %v267
    %v304 = vunpack.c.l.b16 %v268
    %v305 = vunpack.c.l.b16 %v269
    %v306 = vunpack.c.l.b16 %v270
    %v307 = vunpack.c.l.b16 %v271
    %v308 = vunpack.c.l.b16 %v272
    %v309 = vunpack.c.l.b16 %v273
    %v310 = vunpack.c.l.b16 %v274
    %v311 = vunpack.c.l.b16 %v275
    %v312 = vunpack.c.l.b16 %v276
    %v313 = vunpack.c.l.b16 %v277
    %v314 = vunpack.c.l.b16 %v278
    %v315 = vunpack.c.l.b16 %v279
    %v316 = vpack.c.b16 %v301, %v300
    %v317 = vpack.c.b16 %v303, %v302
    %v318 = vpack.c.b16 %v305, %v304
    %v319 = vpack.c.b16 %v307, %v306
    %v320 = vpack.c.b16 %v309, %v308
    %v321 = vpack.c.b16 %v311, %v310
    %v322 = vpack.c.b16 %v313, %v312
    %v323 = vpack.c.b16 %v315, %v314
    %332 = vmatpush.bf16.msra.mxu0 %v323
    %333 = vmatpush.bf16.msra.mxu0 %v322
    %334 = vmatpush.bf16.msra.mxu0 %v321
    %335 = vmatpush.bf16.msra.mxu0 %v320
    %336 = vmatpush.bf16.msra.mxu0 %v319
    %337 = vmatpush.bf16.msra.mxu0 %v318
    %338 = vmatpush.bf16.msra.mxu0 %v317
    %339 = vmatpush.bf16.msra.mxu0 %v316
    %340 = vmatmul.bf16.gmra.mxu0 %v263
    %v341 = vpop.f32.mrf.mxu0
    %v342 = vadd.f32 %v282, %v341
    %v343 = vpop.f32.mrf.mxu0
    %344 = vdwg.mxu0
    %vm345 = vcmask 64512
    %v346 = vsel %vm345, %v342, -inf
    %347 = vmax.xlane.f32.xlu0 %v346
    %v348 = vpop.xlane.xlu0 %347
    %v349 = vsub.f32 %v342, %v348
    %v350 = vmul.f32 %v349, 1.442695
    %v351 = vpow.pop %v350
    %v352 = vsel %vm345, %v351, 0.0
    %353 = vadd.xlane.f32.xlu0 %v352
    %v354 = vpop.xlane.xlu0 %353
    %v355 = vpack.c.bf16 %v351, %v351
    %v356 = vld [vmem:[#allocation3] sm:$0xf]
    %v358 = vsel %vm345, %v355, 0
    %vm360 = vcmask 1043456
    %v362 = vsel %vm360, %v356, 0
    %364 = vmatpush.bf16.msra.mxu0 0
    %365 = vmatpush.bf16.msra.mxu0 0
    %366 = vmatpush.bf16.msra.mxu0 0
    %367 = vmatpush.bf16.msra.mxu0 0
    %368 = vmatpush.bf16.msra.mxu0 0
    %369 = vmatpush.bf16.msra.mxu0 0
    %370 = vmatpush.bf16.msra.mxu0 0
    %371 = vmatpush.bf16.msra.mxu0 %v362
    %372 = vmatmul.bf16.gmra.mxu0 %v358
    %v373 = vpop.f32.mrf.mxu0
    %v374 = vadd.f32 0.0, %v373
    %v375 = vpop.f32.mrf.mxu0
    %376 = vdwg.mxu0
    %v377 = vrcp.pop %v354
    %v378 = vmul.f32 %v374, %v377
    %379 = vst [vmem:[#allocation12] sm:$0xff] %v378
    // Predicated region
    $region42: #{tpu_custom_call.1} parent=1 // pred_check
      _
    $region43: #{tpu_custom_call.1} parent=1 // pred_check_branch
      %381 = sbr.rel (0) target = $region45
    $region44: #{tpu_custom_call.1} parent=1 // pred_region
      %383 = vsyncadd [#allocation6], 0
      %s385 = sshll.u32 [#allocation12], 4
      %s386 = int_to_ptr.vmem [resolvable:$true] %s385
      %s387 = sshll.u32 %s5, 4
      %s388 = int_to_ptr.hbm [resolvable:$true] %s387
      %390 = dma.vmem_to_hbm [thread:$0]  %s386, 128, %s388, [#allocation6]
    $region45: #{tpu_custom_call.1} parent=1 // pred_fallthru
      _
    // Predicated region
    $region46: #{tpu_custom_call.1} parent=1 // pred_check
      _
    $region47: #{tpu_custom_call.1} parent=1 // pred_check_branch
      %392 = sbr.rel (0) target = $region49
    $region48: #{tpu_custom_call.1} parent=1 // pred_region
      %394 = dma.done [#allocation6], 128
    $region49: #{tpu_custom_call.1} parent=1 // pred_fallthru
      _
    %395 = vsyncpa [#allocation5], 1
    %396 = vsyncpa [#allocation8], 1
    %397 = vsyncpa [#allocation11], 1
    %398 = vsyncpa [#allocation6], 1

</llo_original>
